<compile_context>
chip_gen: v7x
topology: tpu7x:2x2x1
jax: 0.10.0
libtpu: 0.0.40
codegen_flags: <defaults>
</compile_context>

<pallas_src>
import jax
import jax.numpy as jnp
from jax import lax
from jax.experimental import pallas as pl
from jax.experimental.pallas import tpu as pltpu


def _spectral_mul_kernel(x_ref, w_ref, o_ref):
    # x_ref : [2, C_in*E, L] f32  packed (real, imag); rows are c_in-major,
    #                             mode-block (e) minor; lanes = (b, c_out, f).
    # w_ref : [2, C_in*E, L] f32  same layout (weights broadcast over b).
    # o_ref : [2*E, L]       f32  rows 0..E-1 = real per mode-block,
    #                             rows E..2E-1 = imag per mode-block.
    E = o_ref.shape[0] // 2
    C_in = x_ref.shape[1] // E

    xr = x_ref[0]                     # [C_in*E, L]
    xi = x_ref[1]
    wr = w_ref[0]
    wi = w_ref[1]

    # Naive complex product: 4 mul + 2 add per element on the VPU.
    pr = xr * wr - xi * wi            # [C_in*E, L]
    pi = xr * wi + xi * wr

    # Segmented reduce over C_in: each c_in owns a contiguous [E, L] slab.
    out_r = pr[0:E]
    out_i = pi[0:E]
    for c in range(1, C_in):          # static trip count -> unrolled at trace
        out_r = out_r + pr[c * E:(c + 1) * E]
        out_i = out_i + pi[c * E:(c + 1) * E]

    # Two direct slab stores into the (2*E, L) = (8, 128) output buffer.
    o_ref[0:E, :] = out_r
    o_ref[E:2 * E, :] = out_i


def spectral_mul(xb, wb, num_blocks):
    """xb, wb: [2, C_in*E, L] f32 -> out [2*E, L] f32 (single invocation)."""
    L = xb.shape[2]
    return pl.pallas_call(
        _spectral_mul_kernel,
        out_shape=jax.ShapeDtypeStruct((2 * num_blocks, L), jnp.float32),
        in_specs=[pl.BlockSpec(memory_space=pltpu.MemorySpace.VMEM),
                  pl.BlockSpec(memory_space=pltpu.MemorySpace.VMEM)],
        out_specs=pl.BlockSpec(memory_space=pltpu.MemorySpace.VMEM),
    )(xb, wb)


def group_spectral_conv2d(x, weights1, weights2, *, groups, in_channels,
                          out_channels, modes1, modes2):
    """Forward pass matching the PyTorch GroupSpectralConv2d module."""
    B = x.shape[0]
    H, W = x.shape[-2], x.shape[-1]
    Wf = W // 2 + 1
    m1, m2 = modes1, modes2
    F = m1 * m2
    E = groups * 2                       # {low-row, high-row} blocks per group
    L = B * out_channels * F             # lane axis (128 at the test sizes)

    # TODO(synk): rfft2/irfft2 have no clean Pallas equivalent; done in plain JAX.
    x_ft = jnp.fft.rfft2(x).reshape(B, groups, in_channels, H, Wf)

    top = x_ft[:, :, :, :m1, :m2]                              # low-freq rows
    bot = x_ft[:, :, :, H - m1:, :m2]                          # high (neg) rows
    xsel = jnp.stack([top, bot], axis=2)                       # [B, G, 2, C_in, m1, m2]
    xsel = jnp.transpose(xsel, (3, 1, 2, 0, 4, 5))             # [C_in, G, 2, B, m1, m2]
    xsel = xsel.reshape(in_channels, E, B, F)                  # [C_in, E, B, F]

    # Pack real/imag; lanes = (b, c_out, f) (broadcast x over c_out).
    xri = jnp.stack([jnp.real(xsel), jnp.imag(xsel)], axis=0
                    ).astype(jnp.float32)                      # [2, C_in, E, B, F]
    xb = jnp.broadcast_to(
        xri[:, :, :, :, None, :],
        (2, in_channels, E, B, out_channels, F)).reshape(2, in_channels * E, L)

    # Weights: pack real/imag; broadcast over b on the lane axis.
    w1 = weights1.reshape(groups, in_channels, out_channels, m1, m2, 2)
    w2 = weights2.reshape(groups, in_channels, out_channels, m1, m2, 2)
    w = jnp.stack([w1, w2], axis=1)                            # [G, 2, C_in, C_out, m1, m2, 2]
    w = jnp.transpose(w, (2, 0, 1, 3, 4, 5, 6))                # [C_in, G, 2, C_out, m1, m2, 2]
    w = w.reshape(in_channels, E, out_channels, F, 2)
    wri = jnp.stack([w[..., 0], w[..., 1]], axis=0
                    ).astype(jnp.float32)                      # [2, C_in, E, C_out, F]
    wb = jnp.broadcast_to(
        wri[:, :, :, None, :, :],
        (2, in_channels, E, B, out_channels, F)).reshape(2, in_channels * E, L)

    out = spectral_mul(xb, wb, E)                              # [2*E, L]
    out = out.reshape(2, E, B, out_channels, m1, m2)
    out_c = (out[0] + 1j * out[1]).astype(jnp.complex64)       # [E, B, C_out, m1, m2]
    out_c = jnp.transpose(out_c, (1, 0, 2, 3, 4))              # [B, E, C_out, m1, m2]
    out_c = out_c.reshape(B, groups, 2, out_channels, m1, m2)

    out_ft = jnp.zeros((B, groups, out_channels, H, Wf), dtype=jnp.complex64)
    out_ft = lax.dynamic_update_slice(out_ft, out_c[:, :, 0], (0, 0, 0, 0, 0))
    out_ft = lax.dynamic_update_slice(out_ft, out_c[:, :, 1], (0, 0, 0, H - m1, 0))
    out_ft = out_ft.reshape(B, groups * out_channels, H, Wf)

    return jnp.fft.irfft2(out_ft, s=(H, W))


def _reference(x, weights1, weights2, *, groups, in_channels, out_channels,
               modes1, modes2):
    """Pure-JAX reference mirroring the PyTorch forward."""
    B = x.shape[0]
    H, W = x.shape[-2], x.shape[-1]
    Wf = W // 2 + 1
    m1, m2 = modes1, modes2
    x_ft = jnp.fft.rfft2(x).reshape(B, groups, in_channels, H, Wf)
    w1 = weights1.reshape(groups, in_channels, out_channels, m1, m2, 2)
    w2 = weights2.reshape(groups, in_channels, out_channels, m1, m2, 2)
    w1c = w1[..., 0] + 1j * w1[..., 1]
    w2c = w2[..., 0] + 1j * w2[..., 1]
    out_ft = jnp.zeros((B, groups, out_channels, H, Wf), dtype=jnp.complex64)
    out_ft = out_ft.at[:, :, :, :m1, :m2].set(
        jnp.einsum('beixy,eioxy->beoxy', x_ft[:, :, :, :m1, :m2], w1c))
    out_ft = out_ft.at[:, :, :, H - m1:, :m2].set(
        jnp.einsum('beixy,eioxy->beoxy', x_ft[:, :, :, H - m1:, :m2], w2c))
    out_ft = out_ft.reshape(B, groups * out_channels, H, Wf)
    return jnp.fft.irfft2(out_ft, s=(H, W))


if __name__ == "__main__":
    # module hyper-params
    groups = 2
    in_channels = 4
    out_channels = 4
    modes1 = 4
    modes2 = 4

    B, H, W = 2, 16, 16
    scale = 1.0 / (in_channels * out_channels)

    key = jax.random.PRNGKey(0)
    kx, kw1, kw2 = jax.random.split(key, 3)
    # input: NCHW, channel dim = groups * in_channels
    x = jax.random.normal(kx, (B, groups * in_channels, H, W), dtype=jnp.float32)
    # parameters: scale * uniform[0,1), matching torch.rand init shapes
    weights1 = scale * jax.random.uniform(
        kw1, (groups * in_channels, out_channels, modes1, modes2, 2),
        dtype=jnp.float32)
    weights2 = scale * jax.random.uniform(
        kw2, (groups * in_channels, out_channels, modes1, modes2, 2),
        dtype=jnp.float32)

    y = group_spectral_conv2d(
        x, weights1, weights2, groups=groups, in_channels=in_channels,
        out_channels=out_channels, modes1=modes1, modes2=modes2)
    y = jax.block_until_ready(y)

    y_ref = _reference(
        x, weights1, weights2, groups=groups, in_channels=in_channels,
        out_channels=out_channels, modes1=modes1, modes2=modes2)
    y_ref = jax.block_until_ready(y_ref)

    assert y.shape == (B, groups * out_channels, H, W)
    assert jnp.allclose(y, y_ref, atol=1e-5, rtol=1e-5), "mismatch vs reference"
    print("KERNEL_OK")
</pallas_src>

<mosaic_0001>
module attributes {stable_mosaic.version = 11 : i64} {
  func.func @_spectral_mul_kernel(%arg0: memref<2x16x128xf32, #tpu.memory_space<vmem>>, %arg1: memref<2x16x128xf32, #tpu.memory_space<vmem>>, %arg2: memref<8x128xf32, #tpu.memory_space<vmem>>) attributes {dimension_semantics = [], scalar_prefetch = 0 : i64, scratch_operands = 0 : i64, tpu.core_type = #tpu.core_type<tc>} {
    %c0 = arith.constant 0 : index
    %c0_0 = arith.constant 0 : index
    %c0_1 = arith.constant 0 : index
    %0 = vector.load %arg0[%c0, %c0_0, %c0_1] : memref<2x16x128xf32, #tpu.memory_space<vmem>>, vector<1x16x128xf32>
    %1 = vector.shape_cast %0 : vector<1x16x128xf32> to vector<16x128xf32>
    %c1 = arith.constant 1 : index
    %c0_2 = arith.constant 0 : index
    %c0_3 = arith.constant 0 : index
    %2 = vector.load %arg0[%c1, %c0_2, %c0_3] : memref<2x16x128xf32, #tpu.memory_space<vmem>>, vector<1x16x128xf32>
    %3 = vector.shape_cast %2 : vector<1x16x128xf32> to vector<16x128xf32>
    %c0_4 = arith.constant 0 : index
    %c0_5 = arith.constant 0 : index
    %c0_6 = arith.constant 0 : index
    %4 = vector.load %arg1[%c0_4, %c0_5, %c0_6] : memref<2x16x128xf32, #tpu.memory_space<vmem>>, vector<1x16x128xf32>
    %5 = vector.shape_cast %4 : vector<1x16x128xf32> to vector<16x128xf32>
    %c1_7 = arith.constant 1 : index
    %c0_8 = arith.constant 0 : index
    %c0_9 = arith.constant 0 : index
    %6 = vector.load %arg1[%c1_7, %c0_8, %c0_9] : memref<2x16x128xf32, #tpu.memory_space<vmem>>, vector<1x16x128xf32>
    %7 = vector.shape_cast %6 : vector<1x16x128xf32> to vector<16x128xf32>
    %8 = arith.mulf %1, %5 : vector<16x128xf32>
    %9 = arith.mulf %3, %7 : vector<16x128xf32>
    %10 = arith.subf %8, %9 : vector<16x128xf32>
    %11 = arith.mulf %1, %7 : vector<16x128xf32>
    %12 = arith.mulf %3, %5 : vector<16x128xf32>
    %13 = arith.addf %11, %12 : vector<16x128xf32>
    %14 = vector.extract_strided_slice %10 {offsets = [0, 0], sizes = [4, 128], strides = [1, 1]} : vector<16x128xf32> to vector<4x128xf32>
    %15 = vector.extract_strided_slice %13 {offsets = [0, 0], sizes = [4, 128], strides = [1, 1]} : vector<16x128xf32> to vector<4x128xf32>
    %16 = vector.extract_strided_slice %10 {offsets = [4, 0], sizes = [4, 128], strides = [1, 1]} : vector<16x128xf32> to vector<4x128xf32>
    %17 = arith.addf %14, %16 : vector<4x128xf32>
    %18 = vector.extract_strided_slice %13 {offsets = [4, 0], sizes = [4, 128], strides = [1, 1]} : vector<16x128xf32> to vector<4x128xf32>
    %19 = arith.addf %15, %18 : vector<4x128xf32>
    %20 = vector.extract_strided_slice %10 {offsets = [8, 0], sizes = [4, 128], strides = [1, 1]} : vector<16x128xf32> to vector<4x128xf32>
    %21 = arith.addf %17, %20 : vector<4x128xf32>
    %22 = vector.extract_strided_slice %13 {offsets = [8, 0], sizes = [4, 128], strides = [1, 1]} : vector<16x128xf32> to vector<4x128xf32>
    %23 = arith.addf %19, %22 : vector<4x128xf32>
    %24 = vector.extract_strided_slice %10 {offsets = [12, 0], sizes = [4, 128], strides = [1, 1]} : vector<16x128xf32> to vector<4x128xf32>
    %25 = arith.addf %21, %24 : vector<4x128xf32>
    %26 = vector.extract_strided_slice %13 {offsets = [12, 0], sizes = [4, 128], strides = [1, 1]} : vector<16x128xf32> to vector<4x128xf32>
    %27 = arith.addf %23, %26 : vector<4x128xf32>
    %c0_10 = arith.constant 0 : index
    %c0_11 = arith.constant 0 : index
    %28 = vector.load %arg2[%c0_10, %c0_11] : memref<8x128xf32, #tpu.memory_space<vmem>>, vector<4x128xf32>
    tpu.vector_store %arg2[%c0_10, %c0_11], %25 {strides = array<i32>} : memref<8x128xf32, #tpu.memory_space<vmem>>, vector<4x128xf32>,
    %c4 = arith.constant 4 : index
    %c0_12 = arith.constant 0 : index
    %29 = vector.load %arg2[%c4, %c0_12] : memref<8x128xf32, #tpu.memory_space<vmem>>, vector<4x128xf32>
    tpu.vector_store %arg2[%c4, %c0_12], %27 {strides = array<i32>} : memref<8x128xf32, #tpu.memory_space<vmem>>, vector<4x128xf32>,
    return
  }
}

</mosaic_0001>

<llo_original>
// kernel: tpu_custom_call.1
$region0: #{tpu_custom_call.1}
  #allocation0 [shape = 'u32[]', space=smem, size = 0x4, offset = 0x4, fixed_abs, tag = 'smem constant byte address 0x4 - core index']
  #allocation1 [shape = 'u32[144,128]{1,0:T(1,128)}', space=vmem, size = 0x12000, scoped, tag = 'internal scratch']
  %s0 = inlined_call_operand.hbm [shape: f32[2,16,128], index: 0, kind: input, shape index: {}]
  %s1 = inlined_call_operand.hbm [shape: f32[2,16,128], index: 1, kind: input, shape index: {}]
  %s2 = inlined_call_operand.hbm [shape: f32[8,128], index: 2, kind: output, shape index: {}]
  %s3 = sld [smem:[#allocation0]]
  $region26: #{tpu_custom_call.1} parent=0
    _
  %s5 = ssub.s32 1, %s3
  %s6 = scalar_select 0, %s5, %s3
  $region1: #{tpu_custom_call.1} parent=0
    #allocation2 [shape = 'u8[16384]{0}', space=vmem, size = 0x4000, scoped, tag = 'input window, operand 0, single buffered']
    #allocation3 [shape = 's32[1]{0}', space=sflag, size = 0x4, scoped, tag = 'scoped memory for tpu_custom_call.1']
    #allocation4 [shape = 's32[1]{0}', space=sflag, size = 0x4, scoped, tag = 'scoped memory for tpu_custom_call.1']
    #allocation5 [shape = 'u8[16384]{0}', space=vmem, size = 0x4000, scoped, tag = 'input window, operand 1, single buffered']
    #allocation6 [shape = 's32[1]{0}', space=sflag, size = 0x4, scoped, tag = 'scoped memory for tpu_custom_call.1']
    #allocation7 [shape = 'u8[4096]{0}', space=vmem, size = 0x1000, scoped, tag = 'output window, operand 0, single buffered']
    %7 = vsyncpa [#allocation3], 0
    %8 = vsyncpa [#allocation6], 0
    %9 = vsyncpa [#allocation4], 0
    // Predicated region
    $region2: #{tpu_custom_call.1} parent=1 // pred_check
      _
    $region3: #{tpu_custom_call.1} parent=1 // pred_check_branch
      %11 = sbr.rel (0) target = $region5
    $region4: #{tpu_custom_call.1} parent=1 // pred_region
      %s13 = ssub.s32 512, 512
      %14 = vsyncadd [#allocation3], %s13
      %s15 = sshll.u32 [#allocation2], 4
      %s16 = int_to_ptr.vmem [resolvable:$true] %s15
      %21 = dma.hbm_to_vmem [thread:$0]  %s0, 512, %s16, [#allocation3], 128, 128, 8
    $region5: #{tpu_custom_call.1} parent=1 // pred_fallthru
      _
    // Predicated region
    $region6: #{tpu_custom_call.1} parent=1 // pred_check
      _
    $region7: #{tpu_custom_call.1} parent=1 // pred_check_branch
      %23 = sbr.rel (0) target = $region9
    $region8: #{tpu_custom_call.1} parent=1 // pred_region
      %s25 = ssub.s32 512, 512
      %26 = vsyncadd [#allocation6], %s25
      %s27 = sshll.u32 [#allocation5], 4
      %s28 = int_to_ptr.vmem [resolvable:$true] %s27
      %33 = dma.hbm_to_vmem [thread:$0]  %s1, 512, %s28, [#allocation6], 128, 128, 8
    $region9: #{tpu_custom_call.1} parent=1 // pred_fallthru
      _
    // Predicated region
    $region10: #{tpu_custom_call.1} parent=1 // pred_check
      _
    $region11: #{tpu_custom_call.1} parent=1 // pred_check_branch
      %35 = sbr.rel (0) target = $region13
    $region12: #{tpu_custom_call.1} parent=1 // pred_region
      %36 = dma.done [#allocation3], 512
    $region13: #{tpu_custom_call.1} parent=1 // pred_fallthru
      _
    // Predicated region
    $region14: #{tpu_custom_call.1} parent=1 // pred_check
      _
    $region15: #{tpu_custom_call.1} parent=1 // pred_check_branch
      %38 = sbr.rel (0) target = $region17
    $region16: #{tpu_custom_call.1} parent=1 // pred_region
      %39 = dma.done [#allocation6], 512
    $region17: #{tpu_custom_call.1} parent=1 // pred_fallthru
      _
    %v40 = vld [vmem:[#allocation2] sm:$0xff]
    %v41 = vld [vmem:[#allocation2 + $0x8] sm:$0xff]
    %s42 = scalar_lea.vmem [#allocation2], 16
    %v43 = vld [vmem:[%s42] sm:$0xff]
    %v44 = vld [vmem:[%s42 + $0x8] sm:$0xff]
    %v45 = vld [vmem:[#allocation5] sm:$0xff]
    %v46 = vld [vmem:[#allocation5 + $0x8] sm:$0xff]
    %s47 = scalar_lea.vmem [#allocation5], 16
    %v48 = vld [vmem:[%s47] sm:$0xff]
    %v49 = vld [vmem:[%s47 + $0x8] sm:$0xff]
    %v50 = vmul.f32 %v40, %v45
    %v51 = vmul.f32 %v41, %v46
    %v52 = vmul.f32 %v43, %v48
    %v53 = vmul.f32 %v44, %v49
    %v54 = vsub.f32 %v50, %v52
    %v55 = vsub.f32 %v51, %v53
    %v56 = vmul.f32 %v40, %v48
    %v57 = vmul.f32 %v41, %v49
    %v58 = vmul.f32 %v43, %v45
    %v59 = vmul.f32 %v44, %v46
    %v60 = vadd.f32 %v56, %v58
    %v61 = vadd.f32 %v57, %v59
    %v63 = vrot.slane %v54, 4
    %v65 = vadd.f32 %v54, %v63
    %v67 = vrot.slane %v60, 4
    %v69 = vadd.f32 %v60, %v67
    %v70 = vadd.f32 %v65, %v55
    %v71 = vadd.f32 %v69, %v61
    %v73 = vrot.slane %v55, 4
    %v75 = vadd.f32 %v70, %v73
    %v77 = vrot.slane %v61, 4
    %v79 = vadd.f32 %v71, %v77
    %80 = vst [vmem:[#allocation7] sm:$0xf] %v75
    %81 = vst [vmem:[#allocation7 + $0x4] sm:$0xf] %v79
    // Predicated region
    $region18: #{tpu_custom_call.1} parent=1 // pred_check
      _
    $region19: #{tpu_custom_call.1} parent=1 // pred_check_branch
      %83 = sbr.rel (0) target = $region21
    $region20: #{tpu_custom_call.1} parent=1 // pred_region
      %s85 = ssub.s32 128, 128
      %86 = vsyncadd [#allocation4], %s85
      %s88 = sshll.u32 [#allocation7], 4
      %s89 = int_to_ptr.vmem [resolvable:$true] %s88
      %91 = dma.vmem_to_hbm [thread:$0]  %s89, 128, %s2, [#allocation4]
    $region21: #{tpu_custom_call.1} parent=1 // pred_fallthru
      _
    // Predicated region
    $region22: #{tpu_custom_call.1} parent=1 // pred_check
      _
    $region23: #{tpu_custom_call.1} parent=1 // pred_check_branch
      %93 = sbr.rel (0) target = $region25
    $region24: #{tpu_custom_call.1} parent=1 // pred_region
      %94 = dma.done [#allocation4], 128
    $region25: #{tpu_custom_call.1} parent=1 // pred_fallthru
      _
    %95 = vsyncpa [#allocation3], 1
    %96 = vsyncpa [#allocation6], 1
    %97 = vsyncpa [#allocation4], 1

</llo_original>
